<compile_context>
chip_gen: v6e
topology: v6e:2x2x1
jax: 0.10.0
libtpu: 0.0.40
codegen_flags: <defaults>
</compile_context>

<pallas_src>
import functools

import jax
import jax.numpy as jnp
from jax.experimental import pallas as pl
from jax.experimental.pallas import tpu as pltpu


_VMEM_LIMIT = 64 * 1024 * 1024   # <= physical VMEM on v5e/v6e (128 MiB) and v7x (64 MiB)


def _cparams(*sem):
    return pltpu.CompilerParams(dimension_semantics=tuple(sem),
                                vmem_limit_bytes=_VMEM_LIMIT)


def _round_up(n, m):
    return ((n + m - 1) // m) * m


def _row_tile(n, cap=2048):
    # Biggest tile that (a) fits comfortably in scoped VMEM, (b) is sublane (8) aligned,
    # and (c) leaves >= 2 grid steps so both v7x TensorCores get work on "parallel" axes.
    if n <= 16:
        return n
    t = min(cap, _round_up((n + 1) // 2, 8))
    return min(t, n)


# ----------------------------- in-kernel helpers -----------------------------

def _erf_approx(x):
    # Abramowitz & Stegun 7.1.26, |err| < 1.5e-7 (f32).  Only mul/add/abs/select/exp so it
    # lowers cleanly in Mosaic (exp goes to the EUP slot).
    p = 0.3275911
    a1, a2, a3, a4, a5 = (0.254829592, -0.284496736, 1.421413741,
                          -1.453152027, 1.061405429)
    s = jnp.where(x >= 0.0, 1.0, -1.0)
    ax = jnp.abs(x)
    t = 1.0 / (1.0 + p * ax)
    poly = ((((a5 * t + a4) * t + a3) * t + a2) * t + a1) * t
    return s * (1.0 - poly * jnp.exp(-ax * ax))


def _gelu_exact(x):
    # PyTorch F.gelu default = exact erf-based GELU (f32 math).
    return 0.5 * x * (1.0 + _erf_approx(x * 0.7071067811865476))


# ------------------------------- Pallas kernels -------------------------------

def _p_fused_kernel(x_ref, g_ref, wx_ref, wg_ref, b_ref, o_ref):
    # All n_a p_linears in one shot: y = x @ blockdiag(Wx) + gx*wgx + gy*wgy + b.
    # TODO(synk): grid coords could be generated in-kernel with broadcasted_iota to avoid
    # streaming the small (N,2) grid array; kept as an input for lowering robustness.
    y = jnp.dot(x_ref[...], wx_ref[...], preferred_element_type=jnp.float32)
    y = y + g_ref[:, 0:1] * wg_ref[0:1, :] + g_ref[:, 1:2] * wg_ref[1:2, :]
    o_ref[...] = (y + b_ref[...]).astype(o_ref.dtype)


def _normalize_kernel(x_ref, mean_ref, rstd_ref, o_ref):
    # InstanceNorm2d(affine=False) normalize step; per-(b,c) stats precomputed (tiny) in XLA.
    o_ref[0] = (x_ref[0] - mean_ref[0]) * rstd_ref[0]


def _mlp_in_fused_kernel(x_ref, mean_ref, rstd_ref, w1_ref, b1_ref, w2_ref, b2_ref, o_ref):
    # Fused InstanceNorm-normalize -> Conv1x1 -> GELU -> Conv1x1; hidden never leaves VMEM.
    # Weights stream in bf16 (MXU native); accumulate + GELU in f32.
    x = x_ref[0]                                            # (THW, Cin) f32
    xn = (x - mean_ref[0]) * rstd_ref[0]
    h = jnp.dot(xn.astype(jnp.bfloat16), w1_ref[...],
                preferred_element_type=jnp.float32) + b1_ref[...]
    h = _gelu_exact(h)
    y = jnp.dot(h.astype(jnp.bfloat16), w2_ref[...],
                preferred_element_type=jnp.float32) + b2_ref[...]
    o_ref[0] = y.astype(o_ref.dtype)


def _residual_conv_kernel(x3_ref, x1_ref, w_ref, b_ref, o_ref, *, apply_gelu):
    # Fused skip path: gelu?(x1 + x3 @ W + b), writes the layer-output slice directly.
    y = x1_ref[...] + jnp.dot(x3_ref[...].astype(jnp.bfloat16), w_ref[...],
                              preferred_element_type=jnp.float32) + b_ref[...]
    if apply_gelu:
        y = _gelu_exact(y)
    o_ref[...] = y.astype(o_ref.dtype)


def _spectral_bd_kernel(x_ref, w_ref, o_ref):
    # Single lane-dense matmul over ALL retained Fourier modes: block-diagonal stacked-real
    # weight (bf16), X = [real | imag] per mode.  Weight-HBM-bound -> bf16 halves traffic.
    o_ref[...] = jnp.dot(x_ref[...].astype(jnp.bfloat16), w_ref[...],
                         preferred_element_type=jnp.float32).astype(o_ref.dtype)


def _spectral_mix_kernel(x_ref, w_ref, o_ref):
    # Fallback for large mode counts: batched stacked-real complex channel mixing.
    o_ref[...] = jnp.einsum(
        "mbi,mio->mbo", x_ref[...], w_ref[...],
        preferred_element_type=jnp.float32).astype(o_ref.dtype)


# ------------------------------- kernel wrappers -------------------------------

def p_linears_fused(x2d, g2d, Wx, Wg, bias):
    """All n_a p_linears + grid concat fused: (N, T_in*n_a) -> (N, width*n_a)."""
    N, Cin = x2d.shape
    Cout = Wx.shape[1]
    TN = _row_tile(N)
    return pl.pallas_call(
        _p_fused_kernel,
        out_shape=jax.ShapeDtypeStruct((N, Cout), jnp.float32),
        grid=(pl.cdiv(N, TN),),
        in_specs=[pl.BlockSpec((TN, Cin), lambda i: (i, 0)),
                  pl.BlockSpec((TN, 2), lambda i: (i, 0)),
                  pl.BlockSpec((Cin, Cout), lambda i: (0, 0)),
                  pl.BlockSpec((2, Cout), lambda i: (0, 0)),
                  pl.BlockSpec((1, Cout), lambda i: (0, 0))],
        out_specs=pl.BlockSpec((TN, Cout), lambda i: (i, 0)),
        compiler_params=_cparams("parallel"),
    )(x2d, g2d, Wx, Wg, bias)


def instance_normalize(x_nhwc, mean_bc, rstd_bc):
    """InstanceNorm2d(affine=False) normalize; stats are tiny (B,C) arrays from XLA."""
    B, H, W, C = x_nhwc.shape
    HW = H * W
    THW = _row_tile(HW)
    y = pl.pallas_call(
        _normalize_kernel,
        out_shape=jax.ShapeDtypeStruct((B, HW, C), jnp.float32),
        grid=(B, pl.cdiv(HW, THW)),
        in_specs=[pl.BlockSpec((1, THW, C), lambda b, t: (b, t, 0)),
                  pl.BlockSpec((1, 1, C), lambda b, t: (b, 0, 0)),
                  pl.BlockSpec((1, 1, C), lambda b, t: (b, 0, 0))],
        out_specs=pl.BlockSpec((1, THW, C), lambda b, t: (b, t, 0)),
        compiler_params=_cparams("parallel", "parallel"),
    )(x_nhwc.reshape(B, HW, C), mean_bc.reshape(B, 1, C), rstd_bc.reshape(B, 1, C))
    return y.reshape(B, H, W, C)


def mlp2d_in_fused(x_nhwc, mean_bc, rstd_bc, p):
    """(optional InstanceNorm) -> Conv1x1 -> GELU -> Conv1x1 fused in one Pallas kernel."""
    B, H, W, Cin = x_nhwc.shape
    Cmid = p["W1"].shape[1]
    Cout = p["W2"].shape[1]
    HW = H * W
    THW = _row_tile(HW)
    y = pl.pallas_call(
        _mlp_in_fused_kernel,
        out_shape=jax.ShapeDtypeStruct((B, HW, Cout), jnp.float32),
        grid=(B, pl.cdiv(HW, THW)),
        in_specs=[pl.BlockSpec((1, THW, Cin), lambda b, t: (b, t, 0)),
                  pl.BlockSpec((1, 1, Cin), lambda b, t: (b, 0, 0)),
                  pl.BlockSpec((1, 1, Cin), lambda b, t: (b, 0, 0)),
                  pl.BlockSpec((Cin, Cmid), lambda b, t: (0, 0)),
                  pl.BlockSpec((1, Cmid), lambda b, t: (0, 0)),
                  pl.BlockSpec((Cmid, Cout), lambda b, t: (0, 0)),
                  pl.BlockSpec((1, Cout), lambda b, t: (0, 0))],
        out_specs=pl.BlockSpec((1, THW, Cout), lambda b, t: (b, t, 0)),
        compiler_params=_cparams("parallel", "parallel"),
    )(x_nhwc.reshape(B, HW, Cin), mean_bc.reshape(B, 1, Cin), rstd_bc.reshape(B, 1, Cin),
      p["W1"], p["b1"].reshape(1, Cmid), p["W2"], p["b2"].reshape(1, Cout))
    return y.reshape(B, H, W, Cout)


def residual_conv1x1(x3_nhwc, x1_nhwc, W, b, apply_gelu):
    """Fused skip path: gelu?(x1 + conv1x1(x3))."""
    B, H, Wd, Cin = x3_nhwc.shape
    Cout = W.shape[1]
    N = B * H * Wd
    TN = _row_tile(N)
    y = pl.pallas_call(
        functools.partial(_residual_conv_kernel, apply_gelu=apply_gelu),
        out_shape=jax.ShapeDtypeStruct((N, Cout), jnp.float32),
        grid=(pl.cdiv(N, TN),),
        in_specs=[pl.BlockSpec((TN, Cin), lambda i: (i, 0)),
                  pl.BlockSpec((TN, Cout), lambda i: (i, 0)),
                  pl.BlockSpec((Cin, Cout), lambda i: (0, 0)),
                  pl.BlockSpec((1, Cout), lambda i: (0, 0))],
        out_specs=pl.BlockSpec((TN, Cout), lambda i: (i, 0)),
        compiler_params=_cparams("parallel"),
    )(x3_nhwc.reshape(N, Cin), x1_nhwc.reshape(N, Cout), W, b.reshape(1, Cout))
    return y.reshape(B, H, Wd, Cout)


def spectral_conv2d(x_nhwc, spec, m1, m2):
    """SpectralConv2d: rfft2 -> low-mode complex mixing in Pallas -> irfft2."""
    B, H, W, Cin = x_nhwc.shape
    Cout = spec["cout"]
    M = 2 * m1 * m2

    # TODO(synk): FFT has no Pallas primitive; rfft2/irfft2 run as plain JAX (XLA) ops.
    x_ft = jnp.fft.rfft2(x_nhwc, axes=(1, 2))                           # (B,H,W//2+1,Cin)
    modes = jnp.concatenate([x_ft[:, :m1, :m2, :], x_ft[:, H - m1:, :m2, :]], axis=1)
    xm = modes.reshape(B, M, Cin)                                       # (B, M, Cin) complex
    X = jnp.concatenate([jnp.real(xm), jnp.imag(xm)], axis=-1).astype(jnp.float32)

    if "bd" in spec:
        # One lane-dense matmul over all modes; bf16 block-diagonal stacked-real weight.
        Kin, Kout = M * 2 * Cin, M * 2 * Cout
        Y = pl.pallas_call(
            _spectral_bd_kernel,
            out_shape=jax.ShapeDtypeStruct((B, Kout), jnp.float32),
            grid=(1,),
            in_specs=[pl.BlockSpec((B, Kin), lambda i: (0, 0)),
                      pl.BlockSpec((Kin, Kout), lambda i: (0, 0))],
            out_specs=pl.BlockSpec((B, Kout), lambda i: (0, 0)),
            compiler_params=_cparams("arbitrary"),
        )(X.reshape(B, Kin), spec["bd"])
        Y = Y.reshape(B, M, 2 * Cout)
    else:
        # Large-mode fallback: per-mode batched mixing, small mode block to fit v7x VMEM.
        Xt = jnp.transpose(X, (1, 0, 2))                                # (M, B, 2Cin)
        w_stacked = spec["stacked"]                                     # (M, 2Cin, 2Cout)
        MBLK = min(M, 64)
        Yt = pl.pallas_call(
            _spectral_mix_kernel,
            out_shape=jax.ShapeDtypeStruct((M, B, 2 * Cout), jnp.float32),
            grid=(pl.cdiv(M, MBLK),),
            in_specs=[pl.BlockSpec((MBLK, B, 2 * Cin), lambda m: (m, 0, 0)),
                      pl.BlockSpec((MBLK, 2 * Cin, 2 * Cout), lambda m: (m, 0, 0))],
            out_specs=pl.BlockSpec((MBLK, B, 2 * Cout), lambda m: (m, 0, 0)),
            compiler_params=_cparams("parallel"),
        )(Xt, w_stacked)
        Y = jnp.transpose(Yt, (1, 0, 2))                                # (B, M, 2Cout)

    y_c = (Y[..., :Cout] + 1j * Y[..., Cout:]).astype(jnp.complex64)
    y_c = y_c.reshape(B, 2 * m1, m2, Cout)
    out_ft = jnp.zeros((B, H, W // 2 + 1, Cout), dtype=jnp.complex64)
    out_ft = out_ft.at[:, :m1, :m2, :].set(y_c[:, :m1])
    out_ft = out_ft.at[:, H - m1:, :m2, :].set(y_c[:, m1:])
    return jnp.fft.irfft2(out_ft, s=(H, W), axes=(1, 2))


# --------------------------------- FNO2d_global ---------------------------------

def _gelu_fusible(n_a, ipo, nW):
    # Fusing the inter-layer GELU into the per-block residual write is valid iff
    # (a) no later block in the same layer re-reads channels written by an earlier block
    #     (PyTorch would see those pre-GELU), and
    # (b) the per-block writes cover all width-blocks of x (uncovered channels would need
    #     a standalone GELU anyway).
    written = set()
    for i in range(len(nW)):
        if any(o in written for o in ipo[i]):
            return False
        written |= set(range(i, i + nW[i]))
    return written >= set(range(n_a))


def fno2d_global_forward(x, params, cfg):
    width, T_in, T_out = cfg["width"], cfg["T_in"], cfg["T_out"]
    n_a, n_layers = cfg["n_a"], cfg["n_layers"]
    ipo, mW, nW = cfg["input_parameter_order"], cfg["mW"], cfg["nW"]
    m1, m2 = cfg["modes1"], cfg["modes2"]
    B, Sx, Sy, _ = x.shape
    N = B * Sx * Sy

    # --- p_linears + get_grid + concat, collapsed into one Pallas kernel ---
    gx = jnp.linspace(0.0, 1.0, Sx, dtype=jnp.float32)
    gy = jnp.linspace(0.0, 1.0, Sy, dtype=jnp.float32)
    g = jnp.stack([jnp.broadcast_to(gx[None, :, None], (B, Sx, Sy)),
                   jnp.broadcast_to(gy[None, None, :], (B, Sx, Sy))], axis=-1).reshape(N, 2)
    x = p_linears_fused(x.reshape(N, T_in * n_a), g,
                        params["pWx"], params["pWg"], params["p_bias"])
    x = x.reshape(B, Sx, Sy, width * n_a)          # channels-last throughout

    fuse_gelu = _gelu_fusible(n_a, ipo, nW)

    for l in range(n_layers):
        apply_gelu = (l != n_layers - 1) and fuse_gelu
        for i in range(len(mW)):
            x3 = jnp.concatenate(
                [x[..., width * o:width * (o + 1)] for o in ipo[i]], axis=-1)

            # InstanceNorm #1: tiny per-(b,c) stats in XLA, normalize in a tiled Pallas kernel.
            mean1 = jnp.mean(x3, axis=(1, 2))
            rstd1 = jax.lax.rsqrt(jnp.var(x3, axis=(1, 2)) + 1e-5)
            xn = instance_normalize(x3, mean1, rstd1)

            xs = spectral_conv2d(xn, params["spec"][l][i], m1, m2)

            # InstanceNorm #2 fused into the MLP kernel (saves one HBM round trip).
            mean2 = jnp.mean(xs, axis=(1, 2))
            rstd2 = jax.lax.rsqrt(jnp.var(xs, axis=(1, 2)) + 1e-5)
            x1 = mlp2d_in_fused(xs, mean2, rstd2, params["mlp"][l][i])

            # conv1x1 skip + residual add + (inter-layer GELU) fused in one kernel.
            y = residual_conv1x1(x3, x1, params["w_W"][l][i], params["w_b"][l][i], apply_gelu)
            x = x.at[..., width * i:width * (i + nW[i])].set(y)
        if (l != n_layers - 1) and not fuse_gelu:
            x = jax.nn.gelu(x, approximate=False)

    # q_linears (Solve_q_linearsWithVariable_x1 branch).  Slicing intentionally mirrors the
    # PyTorch source exactly: start uses width*nW for i==0 and T_out*nW for i>0.
    outs = []
    for i in range(len(nW)):
        cin = width * nW[i]
        start = (width * nW[i] * i) if i == 0 else (T_out * nW[i] * i)
        xi = x[..., start:start + cin]
        ident_mean = jnp.zeros((B, cin), jnp.float32)
        ident_rstd = jnp.ones((B, cin), jnp.float32)
        outs.append(mlp2d_in_fused(xi, ident_mean, ident_rstd, params["q"][i]))
    return jnp.concatenate(outs, axis=-1)           # (B, Sx, Sy, T_out * n_u)


# ---------------------------------- parameters ----------------------------------

def _stack_spectral_weights(w1r, w1i, w2r, w2i):
    # (Cin, Cout, m1, m2) x4 -> (M=2*m1*m2, 2Cin, 2Cout) stacked-real form
    # [[wr, wi], [-wi, wr]] so complex mixing is a single real matmul per mode.
    Cin, Cout, m1, m2 = w1r.shape

    def to_mio(w):
        return jnp.transpose(w.reshape(Cin, Cout, m1 * m2), (2, 0, 1))

    wr = jnp.concatenate([to_mio(w1r), to_mio(w2r)], axis=0)
    wi = jnp.concatenate([to_mio(w1i), to_mio(w2i)], axis=0)
    top = jnp.concatenate([wr, wi], axis=2)
    bot = jnp.concatenate([-wi, wr], axis=2)
    return jnp.concatenate([top, bot], axis=1)       # (M, 2Cin, 2Cout)


def _blockdiag(w):
    # (M, a, b) -> (M*a, M*b) block-diagonal (mode m occupies rows m*a.., cols m*b..).
    M, a, b = w.shape
    eye = jnp.eye(M, dtype=w.dtype)
    return (eye[:, None, :, None] * w[:, :, None, :]).reshape(M * a, M * b)


def init_params(key, cfg):
    width, T_in, T_out = cfg["width"], cfg["T_in"], cfg["T_out"]
    n_a, n_layers = cfg["n_a"], cfg["n_layers"]
    mW, nW = cfg["mW"], cfg["nW"]
    m1, m2 = cfg["modes1"], cfg["modes2"]
    M = 2 * m1 * m2

    keys = iter(jax.random.split(key, 512))

    def nrm(shape, scale=0.1):
        return scale * jax.random.normal(next(keys), shape, dtype=jnp.float32)

    def uni(shape, scale):
        return scale * jax.random.uniform(next(keys), shape, dtype=jnp.float32)

    # p_linears: fuse all n_a Linear(T_in+2 -> width) into block-diag + grid-row layout.
    pW = [nrm((T_in + 2, width)) for _ in range(n_a)]
    pb = [nrm((width,)) for _ in range(n_a)]
    pWx = jnp.zeros((T_in * n_a, width * n_a), jnp.float32)
    pWg = jnp.zeros((2, width * n_a), jnp.float32)
    for a in range(n_a):
        pWx = pWx.at[a * T_in:(a + 1) * T_in, a * width:(a + 1) * width].set(pW[a][:T_in])
        pWg = pWg.at[:, a * width:(a + 1) * width].set(pW[a][T_in:T_in + 2])
    p_bias = jnp.concatenate(pb).reshape(1, width * n_a)

    params = dict(pWx=pWx, pWg=pWg, p_bias=p_bias,
                  spec=[], mlp=[], w_W=[], w_b=[], q=[])

    for _ in range(n_layers):
        sl, ml, wWl, wbl = [], [], [], []
        for i in range(len(mW)):
            cin, cout = width * mW[i], width * nW[i]
            sc = 1.0 / (cin * cout)
            stacked = _stack_spectral_weights(
                uni((cin, cout, m1, m2), sc), uni((cin, cout, m1, m2), sc),
                uni((cin, cout, m1, m2), sc), uni((cin, cout, m1, m2), sc))
            if M * 2 * cin <= 2048 and M * 2 * cout <= 2048:
                sl.append(dict(bd=_blockdiag(stacked).astype(jnp.bfloat16), cout=cout))
            else:
                sl.append(dict(stacked=stacked, cout=cout))
            ml.append(dict(W1=nrm((cout, cout)).astype(jnp.bfloat16), b1=nrm((cout,)),
                           W2=nrm((cout, cout)).astype(jnp.bfloat16), b2=nrm((cout,))))
            wWl.append(nrm((cin, cout)).astype(jnp.bfloat16))
            wbl.append(nrm((cout,)))
        params["spec"].append(sl)
        params["mlp"].append(ml)
        params["w_W"].append(wWl)
        params["w_b"].append(wbl)

    for i in range(len(nW)):
        cin, mid, cout = width * nW[i], width * nW[i] * 4, T_out * nW[i]
        params["q"].append(dict(W1=nrm((cin, mid)).astype(jnp.bfloat16), b1=nrm((mid,)),
                                W2=nrm((mid, cout)).astype(jnp.bfloat16), b2=nrm((cout,))))
    return params


# ------------------------------------- main --------------------------------------

if __name__ == "__main__":
    cfg = dict(
        modes1=4, modes2=4, width=8, T_in=4, T_out=4,
        n_a=2,                     # total_vector_a_elements_i
        n_u=2,                     # total_vector_u_elements_i
        n_layers=2,
        input_parameter_order=[[0, 1], [1]],
        mW=[2, 1],                 # mWidth_input_parameters0
        nW=[1, 1],                 # nWidth_output_parameters0
    )
    key = jax.random.PRNGKey(0)
    k_param, k_x = jax.random.split(key)
    params = init_params(k_param, cfg)

    B, Sx, Sy = 2, 16, 16
    x = jax.random.normal(
        k_x, (B, Sx, Sy, cfg["T_in"] * cfg["n_a"]), dtype=jnp.float32)

    y = fno2d_global_forward(x, params, cfg)
    y = jax.block_until_ready(y)
    assert y.shape == (B, Sx, Sy, cfg["T_out"] * cfg["n_u"]), y.shape
    assert y.dtype == jnp.float32
    print("KERNEL_OK")
</pallas_src>

<mosaic_0001>
module attributes {stable_mosaic.version = 11 : i64} {
  func.func @_p_fused_kernel(%arg0: i32, %arg1: memref<256x8xf32, #tpu.memory_space<vmem>>, %arg2: memref<256x2xf32, #tpu.memory_space<vmem>>, %arg3: memref<8x16xf32, #tpu.memory_space<vmem>>, %arg4: memref<2x16xf32, #tpu.memory_space<vmem>>, %arg5: memref<1x16xf32, #tpu.memory_space<vmem>>, %arg6: memref<256x16xf32, #tpu.memory_space<vmem>>) attributes {dimension_semantics = [#tpu.dimension_semantics<parallel>], iteration_bounds = array<i64: 2>, scalar_prefetch = 0 : i64, scratch_operands = 0 : i64, tpu.core_type = #tpu.core_type<tc>, window_params = [{transform_indices = @transform_0, window_bounds = array<i64: 256, 8>}, {transform_indices = @transform_1, window_bounds = array<i64: 256, 2>}, {pipeline_mode = #tpu.pipeline_mode<synchronous>, transform_indices = @transform_2, window_bounds = array<i64: 8, 16>}, {pipeline_mode = #tpu.pipeline_mode<synchronous>, transform_indices = @transform_3, window_bounds = array<i64: 2, 16>}, {pipeline_mode = #tpu.pipeline_mode<synchronous>, transform_indices = @transform_4, window_bounds = array<i64: 1, 16>}, {transform_indices = @transform_5, window_bounds = array<i64: 256, 16>}]} {
    %c0 = arith.constant 0 : index
    %c0_0 = arith.constant 0 : index
    %0 = vector.load %arg1[%c0, %c0_0] : memref<256x8xf32, #tpu.memory_space<vmem>>, vector<256x8xf32>
    %c0_1 = arith.constant 0 : index
    %c0_2 = arith.constant 0 : index
    %1 = vector.load %arg3[%c0_1, %c0_2] : memref<8x16xf32, #tpu.memory_space<vmem>>, vector<8x16xf32>
    %cst = arith.constant dense<0.000000e+00> : vector<256x16xf32>
    %2 = tpu.matmul %0, %1, %cst {dimension_numbers = #tpu.dot_dimension_numbers<[1], [0], [0], [1], [0, 0, 1, 1], [], []>} : vector<256x8xf32>, vector<8x16xf32>, vector<256x16xf32> -> vector<256x16xf32>
    %c0_3 = arith.constant 0 : index
    %c0_4 = arith.constant 0 : index
    %3 = vector.load %arg2[%c0_3, %c0_4] : memref<256x2xf32, #tpu.memory_space<vmem>>, vector<256x1xf32>
    %c0_5 = arith.constant 0 : index
    %c0_6 = arith.constant 0 : index
    %4 = vector.load %arg4[%c0_5, %c0_6] : memref<2x16xf32, #tpu.memory_space<vmem>>, vector<1x16xf32>
    %5 = vector.broadcast %3 : vector<256x1xf32> to vector<256x16xf32>
    %6 = vector.broadcast %4 : vector<1x16xf32> to vector<256x16xf32>
    %7 = arith.mulf %5, %6 : vector<256x16xf32>
    %8 = arith.addf %2, %7 : vector<256x16xf32>
    %c0_7 = arith.constant 0 : index
    %c1 = arith.constant 1 : index
    %9 = vector.load %arg2[%c0_7, %c1] : memref<256x2xf32, #tpu.memory_space<vmem>>, vector<256x1xf32>
    %c1_8 = arith.constant 1 : index
    %c0_9 = arith.constant 0 : index
    %10 = vector.load %arg4[%c1_8, %c0_9] : memref<2x16xf32, #tpu.memory_space<vmem>>, vector<1x16xf32>
    %11 = vector.broadcast %9 : vector<256x1xf32> to vector<256x16xf32>
    %12 = vector.broadcast %10 : vector<1x16xf32> to vector<256x16xf32>
    %13 = arith.mulf %11, %12 : vector<256x16xf32>
    %14 = arith.addf %8, %13 : vector<256x16xf32>
    %c0_10 = arith.constant 0 : index
    %c0_11 = arith.constant 0 : index
    %15 = vector.load %arg5[%c0_10, %c0_11] : memref<1x16xf32, #tpu.memory_space<vmem>>, vector<1x16xf32>
    %16 = vector.broadcast %15 : vector<1x16xf32> to vector<256x16xf32>
    %17 = arith.addf %14, %16 : vector<256x16xf32>
    %c0_12 = arith.constant 0 : index
    %c0_13 = arith.constant 0 : index
    %18 = vector.load %arg6[%c0_12, %c0_13] : memref<256x16xf32, #tpu.memory_space<vmem>>, vector<256x16xf32>
    tpu.vector_store %arg6[%c0_12, %c0_13], %17 {strides = array<i32>} : memref<256x16xf32, #tpu.memory_space<vmem>>, vector<256x16xf32>,
    return
  }
  func.func @transform_0(%arg0: i32) -> (i32, i32) {
    %c0_i32 = arith.constant 0 : i32
    %c0_i32_0 = arith.constant 0 : i32
    return %arg0, %c0_i32 : i32, i32
  }
  func.func @transform_1(%arg0: i32) -> (i32, i32) {
    %c0_i32 = arith.constant 0 : i32
    %c0_i32_0 = arith.constant 0 : i32
    return %arg0, %c0_i32 : i32, i32
  }
  func.func @transform_2(%arg0: i32) -> (i32, i32) {
    %c0_i32 = arith.constant 0 : i32
    %c0_i32_0 = arith.constant 0 : i32
    %c0_i32_1 = arith.constant 0 : i32
    return %c0_i32, %c0_i32_0 : i32, i32
  }
  func.func @transform_3(%arg0: i32) -> (i32, i32) {
    %c0_i32 = arith.constant 0 : i32
    %c0_i32_0 = arith.constant 0 : i32
    %c0_i32_1 = arith.constant 0 : i32
    return %c0_i32, %c0_i32_0 : i32, i32
  }
  func.func @transform_4(%arg0: i32) -> (i32, i32) {
    %c0_i32 = arith.constant 0 : i32
    %c0_i32_0 = arith.constant 0 : i32
    %c0_i32_1 = arith.constant 0 : i32
    return %c0_i32, %c0_i32_0 : i32, i32
  }
  func.func @transform_5(%arg0: i32) -> (i32, i32) {
    %c0_i32 = arith.constant 0 : i32
    %c0_i32_0 = arith.constant 0 : i32
    return %arg0, %c0_i32 : i32, i32
  }
}

</mosaic_0001>

<llo_original>
// kernel: tpu_custom_call.1
$region0: #{tpu_custom_call.1}
  #allocation0 [shape = 'u32[]', space=smem, size = 0x4, offset = 0x4, fixed_abs, tag = 'smem constant byte address 0x4 - core index']
  #allocation1 [shape = 'u32[144,128]{1,0:T(1,128)}', space=vmem, size = 0x12000, scoped, tag = 'internal scratch']
  %s0 = inlined_call_operand.vmem [shape: f32[512,8], index: 0, kind: input, shape index: {}]
  %s1 = inlined_call_operand.vmem [shape: f32[512,2], index: 1, kind: input, shape index: {}]
  %s2 = inlined_call_operand.vmem [shape: f32[8,16], index: 2, kind: input, shape index: {}]
  %s3 = inlined_call_operand.vmem [shape: f32[2,16], index: 3, kind: input, shape index: {}]
  %s4 = inlined_call_operand.vmem [shape: f32[1,16], index: 4, kind: input, shape index: {}]
  %s5 = inlined_call_operand.vmem [shape: f32[512,16], index: 5, kind: output, shape index: {}]
  %s6 = sld [smem:[#allocation0]]
  $region53: #{tpu_custom_call.1} parent=0
    _
  %s8 = ssub.s32 1, %s6
  %s9 = scalar_select 0, %s8, %s6
  loop: start=0, step=1, limit=4
  $region2: #{tpu_custom_call.1} parent=0 // loop_pre_header
    _
  $region3: #{tpu_custom_call.1} parent=0 // loop_header
    %s11 = sphi 0, %s15
    %p12 = scmp.ge.s32.totalorder %s11, 4
    %s21 = sphi 0, %s23
    %s24 = sphi 0, %s21
    %s25 = sphi 0, %s24
    %s41 = sphi 0, %s25
    %s47 = sphi 0, %s49
    %s50 = sphi 0, %s47
    %s51 = sphi 0, %s50
    %s67 = sphi 0, %s51
    %s71 = sphi 0, %s71
    %s73 = sphi 0, %s71
    %s74 = sphi 0, %s73
    %s88 = sphi 0, %s74
    %s92 = sphi 0, %s92
    %s94 = sphi 0, %s92
    %s95 = sphi 0, %s94
    %s109 = sphi 0, %s95
    %s113 = sphi 0, %s113
    %s115 = sphi 0, %s113
    %s116 = sphi 0, %s115
    %s130 = sphi 0, %s116
    %s136 = sphi 0, %s138
    %s139 = sphi 0, %s136
    %s140 = sphi 0, %s139
    %s156 = sphi 0, %s140
  $region4: #{tpu_custom_call.1} parent=0 // loop_header_branch
    %14 = sbr.rel (%p12) target = $region8
  $region5: #{tpu_custom_call.1} parent=0 // loop_body
    %s16 = ssub.s32 %s11, 1
    %s17 = ssub.s32 %s11, 2
    %s18 = sadd.s32 %s11, 1
    %s19 = ssub.s32 %s11, %s18
    %p20 = scmp.eq.s32.totalorder %s19, 0
    %s22 = sadd.s32 %s21, 1
    %s23 = scalar_select %p20, %s21, %s22
    %p26 = pneg %p20
    %p27 = scmp.eq.s32.totalorder %s11, 1
    %p28 = por %p26, %p27
    %p29 = scmp.ne.s32.totalorder %s21, %s24
    %p30 = scmp.eq.s32.totalorder %s11, 0
    %p31 = por %p29, %p30
    %p32 = scmp.ne.s32.totalorder %s21, %s24
    %p33 = scmp.eq.s32.totalorder %s16, 1
    %p34 = por %p32, %p33
    %p35 = scmp.ne.s32.totalorder %s24, %s25
    %p36 = scmp.eq.s32.totalorder %s16, 0
    %p37 = por %p35, %p36
    %p38 = scmp.ne.s32.totalorder %s24, %s25
    %p39 = scmp.eq.s32.totalorder %s17, 1
    %p40 = por %p38, %p39
    %p42 = scmp.ne.s32.totalorder %s25, %s41
    %p43 = scmp.eq.s32.totalorder %s17, 0
    %p44 = por %p42, %p43
    %s45 = ssub.s32 %s11, %s18
    %p46 = scmp.eq.s32.totalorder %s45, 0
    %s48 = sadd.s32 %s47, 1
    %s49 = scalar_select %p46, %s47, %s48
    %p52 = pneg %p46
    %p53 = scmp.eq.s32.totalorder %s11, 1
    %p54 = por %p52, %p53
    %p55 = scmp.ne.s32.totalorder %s47, %s50
    %p56 = scmp.eq.s32.totalorder %s11, 0
    %p57 = por %p55, %p56
    %p58 = scmp.ne.s32.totalorder %s47, %s50
    %p59 = scmp.eq.s32.totalorder %s16, 1
    %p60 = por %p58, %p59
    %p61 = scmp.ne.s32.totalorder %s50, %s51
    %p62 = scmp.eq.s32.totalorder %s16, 0
    %p63 = por %p61, %p62
    %p64 = scmp.ne.s32.totalorder %s50, %s51
    %p65 = scmp.eq.s32.totalorder %s17, 1
    %p66 = por %p64, %p65
    %p68 = scmp.ne.s32.totalorder %s51, %s67
    %p69 = scmp.eq.s32.totalorder %s17, 0
    %p70 = por %p68, %p69
    %s72 = sadd.s32 %s71, 1
    %p75 = scmp.eq.s32.totalorder %s11, 1
    %p76 = scmp.ne.s32.totalorder %s71, %s73
    %p77 = scmp.eq.s32.totalorder %s11, 0
    %p78 = por %p76, %p77
    %p79 = scmp.ne.s32.totalorder %s71, %s73
    %p80 = scmp.eq.s32.totalorder %s16, 1
    %p81 = por %p79, %p80
    %p82 = scmp.ne.s32.totalorder %s73, %s74
    %p83 = scmp.eq.s32.totalorder %s16, 0
    %p84 = por %p82, %p83
    %p85 = scmp.ne.s32.totalorder %s73, %s74
    %p86 = scmp.eq.s32.totalorder %s17, 1
    %p87 = por %p85, %p86
    %p89 = scmp.ne.s32.totalorder %s74, %s88
    %p90 = scmp.eq.s32.totalorder %s17, 0
    %p91 = por %p89, %p90
    %s93 = sadd.s32 %s92, 1
    %p96 = scmp.eq.s32.totalorder %s11, 1
    %p97 = scmp.ne.s32.totalorder %s92, %s94
    %p98 = scmp.eq.s32.totalorder %s11, 0
    %p99 = por %p97, %p98
    %p100 = scmp.ne.s32.totalorder %s92, %s94
    %p101 = scmp.eq.s32.totalorder %s16, 1
    %p102 = por %p100, %p101
    %p103 = scmp.ne.s32.totalorder %s94, %s95
    %p104 = scmp.eq.s32.totalorder %s16, 0
    %p105 = por %p103, %p104
    %p106 = scmp.ne.s32.totalorder %s94, %s95
    %p107 = scmp.eq.s32.totalorder %s17, 1
    %p108 = por %p106, %p107
    %p110 = scmp.ne.s32.totalorder %s95, %s109
    %p111 = scmp.eq.s32.totalorder %s17, 0
    %p112 = por %p110, %p111
    %s114 = sadd.s32 %s113, 1
    %p117 = scmp.eq.s32.totalorder %s11, 1
    %p118 = scmp.ne.s32.totalorder %s113, %s115
    %p119 = scmp.eq.s32.totalorder %s11, 0
    %p120 = por %p118, %p119
    %p121 = scmp.ne.s32.totalorder %s113, %s115
    %p122 = scmp.eq.s32.totalorder %s16, 1
    %p123 = por %p121, %p122
    %p124 = scmp.ne.s32.totalorder %s115, %s116
    %p125 = scmp.eq.s32.totalorder %s16, 0
    %p126 = por %p124, %p125
    %p127 = scmp.ne.s32.totalorder %s115, %s116
    %p128 = scmp.eq.s32.totalorder %s17, 1
    %p129 = por %p127, %p128
    %p131 = scmp.ne.s32.totalorder %s116, %s130
    %p132 = scmp.eq.s32.totalorder %s17, 0
    %p133 = por %p131, %p132
    %s134 = ssub.s32 %s11, %s18
    %p135 = scmp.eq.s32.totalorder %s134, 0
    %s137 = sadd.s32 %s136, 1
    %s138 = scalar_select %p135, %s136, %s137
    %p141 = pneg %p135
    %p142 = scmp.eq.s32.totalorder %s11, 1
    %p143 = por %p141, %p142
    %p144 = scmp.ne.s32.totalorder %s136, %s139
    %p145 = scmp.eq.s32.totalorder %s11, 0
    %p146 = por %p144, %p145
    %p147 = scmp.ne.s32.totalorder %s136, %s139
    %p148 = scmp.eq.s32.totalorder %s16, 1
    %p149 = por %p147, %p148
    %p150 = scmp.ne.s32.totalorder %s139, %s140
    %p151 = scmp.eq.s32.totalorder %s16, 0
    %p152 = por %p150, %p151
    %p153 = scmp.ne.s32.totalorder %s139, %s140
    %p154 = scmp.eq.s32.totalorder %s17, 1
    %p155 = por %p153, %p154
    %p157 = scmp.ne.s32.totalorder %s140, %s156
    %p158 = scmp.eq.s32.totalorder %s17, 0
    %p159 = por %p157, %p158
    %p160 = scmp.le.s32.totalorder 1, %s11
    %p161 = scmp.lt.s32.totalorder %s11, 3
    %p162 = pnand %p160, %p161
    %p163 = pneg %p162
    // Predicated region
    $region9: #{tpu_custom_call.1} parent=5 // pred_check
      _
    $region10: #{tpu_custom_call.1} parent=5 // pred_check_branch
      %165 = sbr.rel (%p162) target = $region12
    $region11: #{tpu_custom_call.1} parent=5 // pred_region
      %s166 = ssub.s32 %s11, 1
      // Predicated region
      $region13: #{tpu_custom_call.1} parent=11 // pred_check
        %p167 = pneg %p84
      $region14: #{tpu_custom_call.1} parent=11 // pred_check_branch
        %169 = sbr.rel (%p167) target = $region16
      $region15: #{tpu_custom_call.1} parent=11 // pred_region
        _
      $region16: #{tpu_custom_call.1} parent=11 // pred_fallthru
        _
      // Predicated region
      $region17: #{tpu_custom_call.1} parent=11 // pred_check
        %p170 = pneg %p105
      $region18: #{tpu_custom_call.1} parent=11 // pred_check_branch
        %172 = sbr.rel (%p170) target = $region20
      $region19: #{tpu_custom_call.1} parent=11 // pred_region
        _
      $region20: #{tpu_custom_call.1} parent=11 // pred_fallthru
        _
      // Predicated region
      $region21: #{tpu_custom_call.1} parent=11 // pred_check
        %p173 = pneg %p126
      $region22: #{tpu_custom_call.1} parent=11 // pred_check_branch
        %175 = sbr.rel (%p173) target = $region24
      $region23: #{tpu_custom_call.1} parent=11 // pred_region
        _
      $region24: #{tpu_custom_call.1} parent=11 // pred_fallthru
        _
    $region12: #{tpu_custom_call.1} parent=5 // pred_fallthru
      _
    %p176 = scmp.lt.s32.totalorder %s11, 2
    // Predicated region
    $region25: #{tpu_custom_call.1} parent=5 // pred_check
      %p177 = pneg %p176
    $region26: #{tpu_custom_call.1} parent=5 // pred_check_branch
      %179 = sbr.rel (%p177) target = $region28
    $region27: #{tpu_custom_call.1} parent=5 // pred_region
      // Predicated region
      $region29: #{tpu_custom_call.1} parent=27 // pred_check
        %p180 = pneg %p31
      $region30: #{tpu_custom_call.1} parent=27 // pred_check_branch
        %182 = sbr.rel (%p180) target = $region32
      $region31: #{tpu_custom_call.1} parent=27 // pred_region
        %s183 = smul.u32 32, %s11
        %p184 = scmp.lt.s32.totalorder %s183, 63
        %s185 = scalar_select %p184, %s183, 63
        %s186 = smul.addr %s185, 8
        %s187 = scalar_lea.vmem %s0, %s186
        %s188 = smul.u32 32, %s11
      $region32: #{tpu_custom_call.1} parent=27 // pred_fallthru
        _
      // Predicated region
      $region33: #{tpu_custom_call.1} parent=27 // pred_check
        %p189 = pneg %p57
      $region34: #{tpu_custom_call.1} parent=27 // pred_check_branch
        %191 = sbr.rel (%p189) target = $region36
      $region35: #{tpu_custom_call.1} parent=27 // pred_region
        %s192 = smul.u32 32, %s11
        %p193 = scmp.lt.s32.totalorder %s192, 63
        %s194 = scalar_select %p193, %s192, 63
        %s195 = smul.addr %s194, 8
        %s196 = scalar_lea.vmem %s1, %s195
        %s197 = smul.u32 32, %s11
      $region36: #{tpu_custom_call.1} parent=27 // pred_fallthru
        _
    $region28: #{tpu_custom_call.1} parent=5 // pred_fallthru
      _
    %p198 = scmp.le.s32.totalorder 1, %s11
    %p199 = scmp.lt.s32.totalorder %s11, 3
    %p200 = pnand %p198, %p199
    %p201 = pneg %p200
    // Predicated region
    $region37: #{tpu_custom_call.1} parent=5 // pred_check
      _
    $region38: #{tpu_custom_call.1} parent=5 // pred_check_branch
      %203 = sbr.rel (%p200) target = $region40
    $region39: #{tpu_custom_call.1} parent=5 // pred_region
      %s204 = ssub.s32 %s11, 1
      %s205 = smul.u32 32, %s16
      %p206 = scmp.lt.s32.totalorder %s205, 63
      %s207 = scalar_select %p206, %s205, 63
      %s208 = smul.addr %s207, 8
      %s209 = scalar_lea.vmem %s0, %s208
      %p210 = pneg %p37
      %p211 = pneg %p34
      %s212 = smul.u32 32, %s16
      %p213 = scmp.lt.s32.totalorder %s212, 63
      %s214 = scalar_select %p213, %s212, 63
      %s215 = smul.addr %s214, 8
      %s216 = scalar_lea.vmem %s1, %s215
      %p217 = pneg %p63
      %p218 = pneg %p60
      %p219 = pneg %p84
      %p220 = pneg %p81
      %p221 = pneg %p105
      %p222 = pneg %p102
      %p223 = pneg %p126
      %p224 = pneg %p123
      %p225 = pneg %p152
      %p226 = pneg %p149
      %s227 = smul.u32 32, %s16
      %p228 = scmp.lt.s32.totalorder %s227, 63
      %s229 = scalar_select %p228, %s227, 63
      %s230 = smul.addr %s229, 8
      %s231 = scalar_lea.vmem %s5, %s230
      %s232 = smul.u32 32, %s16
      %p233 = scmp.lt.s32.totalorder %s232, 63
      %s234 = scalar_select %p233, %s232, 63
      %s235 = smul.addr %s234, 8
      %s236 = scalar_lea.vmem %s0, %s235
      %s237 = smul.u32 32, %s16
      %s238 = smul.u32 32, %s16
      %p239 = scmp.lt.s32.totalorder %s238, 63
      %s240 = scalar_select %p239, %s238, 63
      %s241 = smul.addr %s240, 8
      %s242 = scalar_lea.vmem %s1, %s241
      %s243 = smul.u32 32, %s16
      %s244 = smul.u32 32, %s16
      %p245 = scmp.lt.s32.totalorder %s244, 63
      %s246 = scalar_select %p245, %s244, 63
      %s247 = smul.addr %s246, 8
      %s248 = scalar_lea.vmem %s5, %s247
      %s249 = smul.u32 32, %s16
      %v250 = vld [vmem:[%s236] sm:$0xff]
      %v251 = vld [vmem:[%s236 + $0x8] sm:$0xff]
      %v252 = vld [vmem:[%s236 + $0x10] sm:$0xff]
      %v253 = vld [vmem:[%s236 + $0x18] sm:$0xff]
      %v254 = vld [vmem:[%s236 + $0x20] sm:$0xff]
      %v255 = vld [vmem:[%s236 + $0x28] sm:$0xff]
      %v256 = vld [vmem:[%s236 + $0x30] sm:$0xff]
      %v257 = vld [vmem:[%s236 + $0x38] sm:$0xff]
      %v258 = vld [vmem:[%s236 + $0x40] sm:$0xff]
      %v259 = vld [vmem:[%s236 + $0x48] sm:$0xff]
      %v260 = vld [vmem:[%s236 + $0x50] sm:$0xff]
      %v261 = vld [vmem:[%s236 + $0x58] sm:$0xff]
      %v262 = vld [vmem:[%s236 + $0x60] sm:$0xff]
      %v263 = vld [vmem:[%s236 + $0x68] sm:$0xff]
      %v264 = vld [vmem:[%s236 + $0x70] sm:$0xff]
      %v265 = vld [vmem:[%s236 + $0x78] sm:$0xff]
      %v266 = vld [vmem:[%s236 + $0x80] sm:$0xff]
      %v267 = vld [vmem:[%s236 + $0x88] sm:$0xff]
      %v268 = vld [vmem:[%s236 + $0x90] sm:$0xff]
      %v269 = vld [vmem:[%s236 + $0x98] sm:$0xff]
      %v270 = vld [vmem:[%s236 + $0xa0] sm:$0xff]
      %v271 = vld [vmem:[%s236 + $0xa8] sm:$0xff]
      %v272 = vld [vmem:[%s236 + $0xb0] sm:$0xff]
      %v273 = vld [vmem:[%s236 + $0xb8] sm:$0xff]
      %v274 = vld [vmem:[%s236 + $0xc0] sm:$0xff]
      %v275 = vld [vmem:[%s236 + $0xc8] sm:$0xff]
      %v276 = vld [vmem:[%s236 + $0xd0] sm:$0xff]
      %v277 = vld [vmem:[%s236 + $0xd8] sm:$0xff]
      %v278 = vld [vmem:[%s236 + $0xe0] sm:$0xff]
      %v279 = vld [vmem:[%s236 + $0xe8] sm:$0xff]
      %v280 = vld [vmem:[%s236 + $0xf0] sm:$0xff]
      %v281 = vld [vmem:[%s236 + $0xf8] sm:$0xff]
      %v282 = vld [vmem:[%s2] sm:$0xff]
      %v283 = vld [vmem:[%s242] sm:$0xff]
      %v284 = vld [vmem:[%s242 + $0x8] sm:$0xff]
      %v285 = vld [vmem:[%s242 + $0x10] sm:$0xff]
      %v286 = vld [vmem:[%s242 + $0x18] sm:$0xff]
      %v287 = vld [vmem:[%s242 + $0x20] sm:$0xff]
      %v288 = vld [vmem:[%s242 + $0x28] sm:$0xff]
      %v289 = vld [vmem:[%s242 + $0x30] sm:$0xff]
      %v290 = vld [vmem:[%s242 + $0x38] sm:$0xff]
      %v291 = vld [vmem:[%s242 + $0x40] sm:$0xff]
      %v292 = vld [vmem:[%s242 + $0x48] sm:$0xff]
      %v293 = vld [vmem:[%s242 + $0x50] sm:$0xff]
      %v294 = vld [vmem:[%s242 + $0x58] sm:$0xff]
      %v295 = vld [vmem:[%s242 + $0x60] sm:$0xff]
      %v296 = vld [vmem:[%s242 + $0x68] sm:$0xff]
      %v297 = vld [vmem:[%s242 + $0x70] sm:$0xff]
      %v298 = vld [vmem:[%s242 + $0x78] sm:$0xff]
      %v299 = vld [vmem:[%s242 + $0x80] sm:$0xff]
      %v300 = vld [vmem:[%s242 + $0x88] sm:$0xff]
      %v301 = vld [vmem:[%s242 + $0x90] sm:$0xff]
      %v302 = vld [vmem:[%s242 + $0x98] sm:$0xff]
      %v303 = vld [vmem:[%s242 + $0xa0] sm:$0xff]
      %v304 = vld [vmem:[%s242 + $0xa8] sm:$0xff]
      %v305 = vld [vmem:[%s242 + $0xb0] sm:$0xff]
      %v306 = vld [vmem:[%s242 + $0xb8] sm:$0xff]
      %v307 = vld [vmem:[%s242 + $0xc0] sm:$0xff]
      %v308 = vld [vmem:[%s242 + $0xc8] sm:$0xff]
      %v309 = vld [vmem:[%s242 + $0xd0] sm:$0xff]
      %v310 = vld [vmem:[%s242 + $0xd8] sm:$0xff]
      %v311 = vld [vmem:[%s242 + $0xe0] sm:$0xff]
      %v312 = vld [vmem:[%s242 + $0xe8] sm:$0xff]
      %v313 = vld [vmem:[%s242 + $0xf0] sm:$0xff]
      %v314 = vld [vmem:[%s242 + $0xf8] sm:$0xff]
      %v315 = vld [vmem:[%s3] sm:$0x1]
      %317 = vset.pattern.permute.xlu0 0
      %318 = vperm.xlu0 %317, %v283
      %v319 = vpop.permute.xlu0 %318
      %322 = vset.pattern.permute.xlu0 0
      %323 = vperm.xlu0 %322, %v284
      %v324 = vpop.permute.xlu0 %323
      %327 = vset.pattern.permute.xlu0 0
      %328 = vperm.xlu0 %327, %v285
      %v329 = vpop.permute.xlu0 %328
      %332 = vset.pattern.permute.xlu0 0
      %333 = vperm.xlu0 %332, %v286
      %v334 = vpop.permute.xlu0 %333
      %337 = vset.pattern.permute.xlu0 0
      %338 = vperm.xlu0 %337, %v287
      %v339 = vpop.permute.xlu0 %338
      %342 = vset.pattern.permute.xlu0 0
      %343 = vperm.xlu0 %342, %v288
      %v344 = vpop.permute.xlu0 %343
      %347 = vset.pattern.permute.xlu0 0
      %348 = vperm.xlu0 %347, %v289
      %v349 = vpop.permute.xlu0 %348
      %352 = vset.pattern.permute.xlu0 0
      %353 = vperm.xlu0 %352, %v290
      %v354 = vpop.permute.xlu0 %353
      %357 = vset.pattern.permute.xlu0 0
      %358 = vperm.xlu0 %357, %v291
      %v359 = vpop.permute.xlu0 %358
      %362 = vset.pattern.permute.xlu0 0
      %363 = vperm.xlu0 %362, %v292
      %v364 = vpop.permute.xlu0 %363
      %367 = vset.pattern.permute.xlu0 0
      %368 = vperm.xlu0 %367, %v293
      %v369 = vpop.permute.xlu0 %368
      %372 = vset.pattern.permute.xlu0 0
      %373 = vperm.xlu0 %372, %v294
      %v374 = vpop.permute.xlu0 %373
      %377 = vset.pattern.permute.xlu0 0
      %378 = vperm.xlu0 %377, %v295
      %v379 = vpop.permute.xlu0 %378
      %382 = vset.pattern.permute.xlu0 0
      %383 = vperm.xlu0 %382, %v296
      %v384 = vpop.permute.xlu0 %383
      %387 = vset.pattern.permute.xlu0 0
      %388 = vperm.xlu0 %387, %v297
      %v389 = vpop.permute.xlu0 %388
      %392 = vset.pattern.permute.xlu0 0
      %393 = vperm.xlu0 %392, %v298
      %v394 = vpop.permute.xlu0 %393
      %397 = vset.pattern.permute.xlu0 0
      %398 = vperm.xlu0 %397, %v299
      %v399 = vpop.permute.xlu0 %398
      %402 = vset.pattern.permute.xlu0 0
      %403 = vperm.xlu0 %402, %v300
      %v404 = vpop.permute.xlu0 %403
      %407 = vset.pattern.permute.xlu0 0
      %408 = vperm.xlu0 %407, %v301
      %v409 = vpop.permute.xlu0 %408
      %412 = vset.pattern.permute.xlu0 0
      %413 = vperm.xlu0 %412, %v302
      %v414 = vpop.permute.xlu0 %413
      %417 = vset.pattern.permute.xlu0 0
      %418 = vperm.xlu0 %417, %v303
      %v419 = vpop.permute.xlu0 %418
      %422 = vset.pattern.permute.xlu0 0
      %423 = vperm.xlu0 %422, %v304
      %v424 = vpop.permute.xlu0 %423
      %427 = vset.pattern.permute.xlu0 0
      %428 = vperm.xlu0 %427, %v305
      %v429 = vpop.permute.xlu0 %428
      %432 = vset.pattern.permute.xlu0 0
      %433 = vperm.xlu0 %432, %v306
      %v434 = vpop.permute.xlu0 %433
      %437 = vset.pattern.permute.xlu0 0
      %438 = vperm.xlu0 %437, %v307
      %v439 = vpop.permute.xlu0 %438
      %442 = vset.pattern.permute.xlu0 0
      %443 = vperm.xlu0 %442, %v308
      %v444 = vpop.permute.xlu0 %443
      %447 = vset.pattern.permute.xlu0 0
      %448 = vperm.xlu0 %447, %v309
      %v449 = vpop.permute.xlu0 %448
      %452 = vset.pattern.permute.xlu0 0
      %453 = vperm.xlu0 %452, %v310
      %v454 = vpop.permute.xlu0 %453
      %457 = vset.pattern.permute.xlu0 0
      %458 = vperm.xlu0 %457, %v311
      %v459 = vpop.permute.xlu0 %458
      %462 = vset.pattern.permute.xlu0 0
      %463 = vperm.xlu0 %462, %v312
      %v464 = vpop.permute.xlu0 %463
      %467 = vset.pattern.permute.xlu0 0
      %468 = vperm.xlu0 %467, %v313
      %v469 = vpop.permute.xlu0 %468
      %472 = vset.pattern.permute.xlu0 0
      %473 = vperm.xlu0 %472, %v314
      %v474 = vpop.permute.xlu0 %473
      %v476 = vlaneseq
      %v477 = vshrl.u32 %v476, 7
      %v478 = vsub.s32 0, %v477
      %v479 = vrot.slane %v315, %v478
      %v480 = vmul.f32 %v319, %v479
      %v481 = vmul.f32 %v324, %v479
      %v482 = vmul.f32 %v329, %v479
      %v483 = vmul.f32 %v334, %v479
      %v484 = vmul.f32 %v339, %v479
      %v485 = vmul.f32 %v344, %v479
      %v486 = vmul.f32 %v349, %v479
      %v487 = vmul.f32 %v354, %v479
      %v488 = vmul.f32 %v359, %v479
      %v489 = vmul.f32 %v364, %v479
      %v490 = vmul.f32 %v369, %v479
      %v491 = vmul.f32 %v374, %v479
      %v492 = vmul.f32 %v379, %v479
      %v493 = vmul.f32 %v384, %v479
      %v494 = vmul.f32 %v389, %v479
      %v495 = vmul.f32 %v394, %v479
      %v496 = vmul.f32 %v399, %v479
      %v497 = vmul.f32 %v404, %v479
      %v498 = vmul.f32 %v409, %v479
      %v499 = vmul.f32 %v414, %v479
      %v500 = vmul.f32 %v419, %v479
      %v501 = vmul.f32 %v424, %v479
      %v502 = vmul.f32 %v429, %v479
      %v503 = vmul.f32 %v434, %v479
      %v504 = vmul.f32 %v439, %v479
      %v505 = vmul.f32 %v444, %v479
      %v506 = vmul.f32 %v449, %v479
      %v507 = vmul.f32 %v454, %v479
      %v508 = vmul.f32 %v459, %v479
      %v509 = vmul.f32 %v464, %v479
      %v510 = vmul.f32 %v469, %v479
      %v511 = vmul.f32 %v474, %v479
      %vm512 = vcmask 64512
      %v514 = vsel %vm512, %v250, 0
      %v517 = vsel %vm512, %v251, 0
      %v520 = vsel %vm512, %v252, 0
      %v523 = vsel %vm512, %v253, 0
      %v526 = vsel %vm512, %v254, 0
      %v529 = vsel %vm512, %v255, 0
      %v532 = vsel %vm512, %v256, 0
      %v535 = vsel %vm512, %v257, 0
      %v538 = vsel %vm512, %v258, 0
      %v541 = vsel %vm512, %v259, 0
      %v544 = vsel %vm512, %v260, 0
      %v547 = vsel %vm512, %v261, 0
      %v550 = vsel %vm512, %v262, 0
      %v553 = vsel %vm512, %v263, 0
      %v556 = vsel %vm512, %v264, 0
      %v559 = vsel %vm512, %v265, 0
      %v562 = vsel %vm512, %v266, 0
      %v565 = vsel %vm512, %v267, 0
      %v568 = vsel %vm512, %v268, 0
      %v571 = vsel %vm512, %v269, 0
      %v574 = vsel %vm512, %v270, 0
      %v577 = vsel %vm512, %v271, 0
      %v580 = vsel %vm512, %v272, 0
      %v583 = vsel %vm512, %v273, 0
      %v586 = vsel %vm512, %v274, 0
      %v589 = vsel %vm512, %v275, 0
      %v592 = vsel %vm512, %v276, 0
      %v595 = vsel %vm512, %v277, 0
      %v598 = vsel %vm512, %v278, 0
      %v601 = vsel %vm512, %v279, 0
      %v604 = vsel %vm512, %v280, 0
      %v607 = vsel %vm512, %v281, 0
      %609 = vmatprep.subr.mxu0 0.0
      %610 = vmatpush1.msra.mxu0 0.0
      %611 = vmatprep.subr.mxu0 0.0
      %612 = vmatpush1.msra.mxu0 0.0
      %613 = vmatprep.subr.mxu0 0.0
      %614 = vmatpush1.msra.mxu0 0.0
      %615 = vmatprep.subr.mxu0 0.0
      %616 = vmatpush1.msra.mxu0 0.0
      %617 = vmatprep.subr.mxu0 0.0
      %618 = vmatpush1.msra.mxu0 0.0
      %619 = vmatprep.subr.mxu0 0.0
      %620 = vmatpush1.msra.mxu0 0.0
      %621 = vmatprep.subr.mxu0 0.0
      %622 = vmatpush1.msra.mxu0 0.0
      %623 = vmatprep.subr.mxu0 0.0
      %624 = vmatpush1.msra.mxu0 0.0
      %625 = vmatprep.subr.mxu0 0.0
      %626 = vmatpush1.msra.mxu0 0.0
      %627 = vmatprep.subr.mxu0 0.0
      %628 = vmatpush1.msra.mxu0 0.0
      %629 = vmatprep.subr.mxu0 0.0
      %630 = vmatpush1.msra.mxu0 0.0
      %631 = vmatprep.subr.mxu0 0.0
      %632 = vmatpush1.msra.mxu0 0.0
      %633 = vmatprep.subr.mxu0 0.0
      %634 = vmatpush1.msra.mxu0 0.0
      %635 = vmatprep.subr.mxu0 0.0
      %636 = vmatpush1.msra.mxu0 0.0
      %637 = vmatprep.subr.mxu0 0.0
      %638 = vmatpush1.msra.mxu0 0.0
      %639 = vmatprep.subr.mxu0 0.0
      %640 = vmatpush1.msra.mxu0 %v282
      %641 = vmatprep.subr.mxu0 0.0
      %642 = vmatpush2.msra.mxu0 0.0
      %643 = vmatprep.subr.mxu0 0.0
      %644 = vmatpush2.msra.mxu0 0.0
      %645 = vmatprep.subr.mxu0 0.0
      %646 = vmatpush2.msra.mxu0 0.0
      %647 = vmatprep.subr.mxu0 0.0
      %648 = vmatpush2.msra.mxu0 0.0
      %649 = vmatprep.subr.mxu0 0.0
      %650 = vmatpush2.msra.mxu0 0.0
      %651 = vmatprep.subr.mxu0 0.0
      %652 = vmatpush2.msra.mxu0 0.0
      %653 = vmatprep.subr.mxu0 0.0
      %654 = vmatpush2.msra.mxu0 0.0
      %655 = vmatprep.subr.mxu0 0.0
      %656 = vmatpush2.msra.mxu0 0.0
      %657 = vmatprep.subr.mxu0 0.0
      %658 = vmatpush2.msra.mxu0 0.0
      %659 = vmatprep.subr.mxu0 0.0
      %660 = vmatpush2.msra.mxu0 0.0
      %661 = vmatprep.subr.mxu0 0.0
      %662 = vmatpush2.msra.mxu0 0.0
      %663 = vmatprep.subr.mxu0 0.0
      %664 = vmatpush2.msra.mxu0 0.0
      %665 = vmatprep.subr.mxu0 0.0
      %666 = vmatpush2.msra.mxu0 0.0
      %667 = vmatprep.subr.mxu0 0.0
      %668 = vmatpush2.msra.mxu0 0.0
      %669 = vmatprep.subr.mxu0 0.0
      %670 = vmatpush2.msra.mxu0 0.0
      %671 = vmatprep.subr.mxu0 0.0
      %672 = vmatpush2.msra.mxu0 0.0
      %673 = vmatprep.mubr.f32.mxu0 0.0
      %674 = vmatmul.mubr.f32.gmra.mxu0 %v514
      %v675 = vpop.f32.mrf.mxu0
      %v676 = vadd.f32 %v480, %v675
      %v677 = vpop.f32.mrf.mxu0
      %678 = vmatprep.mubr.f32.mxu0 0.0
      %679 = vmatmul.mubr.f32.gmra.mxu0 %v517
      %v680 = vpop.f32.mrf.mxu0
      %v681 = vadd.f32 %v481, %v680
      %v682 = vpop.f32.mrf.mxu0
      %683 = vmatprep.mubr.f32.mxu0 0.0
      %684 = vmatmul.mubr.f32.gmra.mxu0 %v520
      %v685 = vpop.f32.mrf.mxu0
      %v686 = vadd.f32 %v482, %v685
      %v687 = vpop.f32.mrf.mxu0
      %688 = vmatprep.mubr.f32.mxu0 0.0
      %689 = vmatmul.mubr.f32.gmra.mxu0 %v523
      %v690 = vpop.f32.mrf.mxu0
      %v691 = vadd.f32 %v483, %v690
      %v692 = vpop.f32.mrf.mxu0
      %693 = vmatprep.mubr.f32.mxu0 0.0
      %694 = vmatmul.mubr.f32.gmra.mxu0 %v526
      %v695 = vpop.f32.mrf.mxu0
      %v696 = vadd.f32 %v484, %v695
      %v697 = vpop.f32.mrf.mxu0
      %698 = vmatprep.mubr.f32.mxu0 0.0
      %699 = vmatmul.mubr.f32.gmra.mxu0 %v529
      %v700 = vpop.f32.mrf.mxu0
      %v701 = vadd.f32 %v485, %v700
      %v702 = vpop.f32.mrf.mxu0
      %703 = vmatprep.mubr.f32.mxu0 0.0
      %704 = vmatmul.mubr.f32.gmra.mxu0 %v532
      %v705 = vpop.f32.mrf.mxu0
      %v706 = vadd.f32 %v486, %v705
      %v707 = vpop.f32.mrf.mxu0
      %708 = vmatprep.mubr.f32.mxu0 0.0
      %709 = vmatmul.mubr.f32.gmra.mxu0 %v535
      %v710 = vpop.f32.mrf.mxu0
      %v711 = vadd.f32 %v487, %v710
      %v712 = vpop.f32.mrf.mxu0
      %713 = vmatprep.mubr.f32.mxu0 0.0
      %714 = vmatmul.mubr.f32.gmra.mxu0 %v538
      %v715 = vpop.f32.mrf.mxu0
      %v716 = vadd.f32 %v488, %v715
      %v717 = vpop.f32.mrf.mxu0
      %718 = vmatprep.mubr.f32.mxu0 0.0
      %719 = vmatmul.mubr.f32.gmra.mxu0 %v541
      %v720 = vpop.f32.mrf.mxu0
      %v721 = vadd.f32 %v489, %v720
      %v722 = vpop.f32.mrf.mxu0
      %723 = vmatprep.mubr.f32.mxu0 0.0
      %724 = vmatmul.mubr.f32.gmra.mxu0 %v544
      %v725 = vpop.f32.mrf.mxu0
      %v726 = vadd.f32 %v490, %v725
      %v727 = vpop.f32.mrf.mxu0
      %728 = vmatprep.mubr.f32.mxu0 0.0
      %729 = vmatmul.mubr.f32.gmra.mxu0 %v547
      %v730 = vpop.f32.mrf.mxu0
      %v731 = vadd.f32 %v491, %v730
      %v732 = vpop.f32.mrf.mxu0
      %733 = vmatprep.mubr.f32.mxu0 0.0
      %734 = vmatmul.mubr.f32.gmra.mxu0 %v550
      %v735 = vpop.f32.mrf.mxu0
      %v736 = vadd.f32 %v492, %v735
      %v737 = vpop.f32.mrf.mxu0
      %738 = vmatprep.mubr.f32.mxu0 0.0
      %739 = vmatmul.mubr.f32.gmra.mxu0 %v553
      %v740 = vpop.f32.mrf.mxu0
      %v741 = vadd.f32 %v493, %v740
      %v742 = vpop.f32.mrf.mxu0
      %743 = vmatprep.mubr.f32.mxu0 0.0
      %744 = vmatmul.mubr.f32.gmra.mxu0 %v556
      %v745 = vpop.f32.mrf.mxu0
      %v746 = vadd.f32 %v494, %v745
      %v747 = vpop.f32.mrf.mxu0
      %748 = vmatprep.mubr.f32.mxu0 0.0
      %749 = vmatmul.mubr.f32.gmra.mxu0 %v559
      %v750 = vpop.f32.mrf.mxu0
      %v751 = vadd.f32 %v495, %v750
      %v752 = vpop.f32.mrf.mxu0
      %753 = vmatprep.mubr.f32.mxu0 0.0
      %754 = vmatmul.mubr.f32.gmra.mxu0 %v562
      %v755 = vpop.f32.mrf.mxu0
      %v756 = vadd.f32 %v496, %v755
      %v757 = vpop.f32.mrf.mxu0
      %758 = vmatprep.mubr.f32.mxu0 0.0
      %759 = vmatmul.mubr.f32.gmra.mxu0 %v565
      %v760 = vpop.f32.mrf.mxu0
      %v761 = vadd.f32 %v497, %v760
      %v762 = vpop.f32.mrf.mxu0
      %763 = vmatprep.mubr.f32.mxu0 0.0
      %764 = vmatmul.mubr.f32.gmra.mxu0 %v568
      %v765 = vpop.f32.mrf.mxu0
      %v766 = vadd.f32 %v498, %v765
      %v767 = vpop.f32.mrf.mxu0
      %768 = vmatprep.mubr.f32.mxu0 0.0
      %769 = vmatmul.mubr.f32.gmra.mxu0 %v571
      %v770 = vpop.f32.mrf.mxu0
      %v771 = vadd.f32 %v499, %v770
      %v772 = vpop.f32.mrf.mxu0
      %773 = vmatprep.mubr.f32.mxu0 0.0
      %774 = vmatmul.mubr.f32.gmra.mxu0 %v574
      %v775 = vpop.f32.mrf.mxu0
      %v776 = vadd.f32 %v500, %v775
      %v777 = vpop.f32.mrf.mxu0
      %778 = vmatprep.mubr.f32.mxu0 0.0
      %779 = vmatmul.mubr.f32.gmra.mxu0 %v577
      %v780 = vpop.f32.mrf.mxu0
      %v781 = vadd.f32 %v501, %v780
      %v782 = vpop.f32.mrf.mxu0
      %783 = vmatprep.mubr.f32.mxu0 0.0
      %784 = vmatmul.mubr.f32.gmra.mxu0 %v580
      %v785 = vpop.f32.mrf.mxu0
      %v786 = vadd.f32 %v502, %v785
      %v787 = vpop.f32.mrf.mxu0
      %788 = vmatprep.mubr.f32.mxu0 0.0
      %789 = vmatmul.mubr.f32.gmra.mxu0 %v583
      %v790 = vpop.f32.mrf.mxu0
      %v791 = vadd.f32 %v503, %v790
      %v792 = vpop.f32.mrf.mxu0
      %793 = vmatprep.mubr.f32.mxu0 0.0
      %794 = vmatmul.mubr.f32.gmra.mxu0 %v586
      %v795 = vpop.f32.mrf.mxu0
      %v796 = vadd.f32 %v504, %v795
      %v797 = vpop.f32.mrf.mxu0
      %798 = vmatprep.mubr.f32.mxu0 0.0
      %799 = vmatmul.mubr.f32.gmra.mxu0 %v589
      %v800 = vpop.f32.mrf.mxu0
      %v801 = vadd.f32 %v505, %v800
      %v802 = vpop.f32.mrf.mxu0
      %803 = vmatprep.mubr.f32.mxu0 0.0
      %804 = vmatmul.mubr.f32.gmra.mxu0 %v592
      %v805 = vpop.f32.mrf.mxu0
      %v806 = vadd.f32 %v506, %v805
      %v807 = vpop.f32.mrf.mxu0
      %808 = vmatprep.mubr.f32.mxu0 0.0
      %809 = vmatmul.mubr.f32.gmra.mxu0 %v595
      %v810 = vpop.f32.mrf.mxu0
      %v811 = vadd.f32 %v507, %v810
      %v812 = vpop.f32.mrf.mxu0
      %813 = vmatprep.mubr.f32.mxu0 0.0
      %814 = vmatmul.mubr.f32.gmra.mxu0 %v598
      %v815 = vpop.f32.mrf.mxu0
      %v816 = vadd.f32 %v508, %v815
      %v817 = vpop.f32.mrf.mxu0
      %818 = vmatprep.mubr.f32.mxu0 0.0
      %819 = vmatmul.mubr.f32.gmra.mxu0 %v601
      %v820 = vpop.f32.mrf.mxu0
      %v821 = vadd.f32 %v509, %v820
      %v822 = vpop.f32.mrf.mxu0
      %823 = vmatprep.mubr.f32.mxu0 0.0
      %824 = vmatmul.mubr.f32.gmra.mxu0 %v604
      %v825 = vpop.f32.mrf.mxu0
      %v826 = vadd.f32 %v510, %v825
      %v827 = vpop.f32.mrf.mxu0
      %828 = vmatprep.mubr.f32.mxu0 0.0
      %829 = vmatmul.mubr.f32.gmra.mxu0 %v607
      %v830 = vpop.f32.mrf.mxu0
      %v831 = vadd.f32 %v511, %v830
      %v832 = vpop.f32.mrf.mxu0
      %833 = vdwg.mxu0
      %v834 = vld [vmem:[%s3 + $0x1] sm:$0x1]
      %835 = vset.pattern.permute.xlu0 1
      %836 = vperm.xlu0 %835, %v283
      %v837 = vpop.permute.xlu0 %836
      %839 = vset.pattern.permute.xlu0 1
      %840 = vperm.xlu0 %839, %v284
      %v841 = vpop.permute.xlu0 %840
      %843 = vset.pattern.permute.xlu0 1
      %844 = vperm.xlu0 %843, %v285
      %v845 = vpop.permute.xlu0 %844
      %847 = vset.pattern.permute.xlu0 1
      %848 = vperm.xlu0 %847, %v286
      %v849 = vpop.permute.xlu0 %848
      %851 = vset.pattern.permute.xlu0 1
      %852 = vperm.xlu0 %851, %v287
      %v853 = vpop.permute.xlu0 %852
      %855 = vset.pattern.permute.xlu0 1
      %856 = vperm.xlu0 %855, %v288
      %v857 = vpop.permute.xlu0 %856
      %859 = vset.pattern.permute.xlu0 1
      %860 = vperm.xlu0 %859, %v289
      %v861 = vpop.permute.xlu0 %860
      %863 = vset.pattern.permute.xlu0 1
      %864 = vperm.xlu0 %863, %v290
      %v865 = vpop.permute.xlu0 %864
      %867 = vset.pattern.permute.xlu0 1
      %868 = vperm.xlu0 %867, %v291
      %v869 = vpop.permute.xlu0 %868
      %871 = vset.pattern.permute.xlu0 1
      %872 = vperm.xlu0 %871, %v292
      %v873 = vpop.permute.xlu0 %872
      %875 = vset.pattern.permute.xlu0 1
      %876 = vperm.xlu0 %875, %v293
      %v877 = vpop.permute.xlu0 %876
      %879 = vset.pattern.permute.xlu0 1
      %880 = vperm.xlu0 %879, %v294
      %v881 = vpop.permute.xlu0 %880
      %883 = vset.pattern.permute.xlu0 1
      %884 = vperm.xlu0 %883, %v295
      %v885 = vpop.permute.xlu0 %884
      %887 = vset.pattern.permute.xlu0 1
      %888 = vperm.xlu0 %887, %v296
      %v889 = vpop.permute.xlu0 %888
      %891 = vset.pattern.permute.xlu0 1
      %892 = vperm.xlu0 %891, %v297
      %v893 = vpop.permute.xlu0 %892
      %895 = vset.pattern.permute.xlu0 1
      %896 = vperm.xlu0 %895, %v298
      %v897 = vpop.permute.xlu0 %896
      %899 = vset.pattern.permute.xlu0 1
      %900 = vperm.xlu0 %899, %v299
      %v901 = vpop.permute.xlu0 %900
      %903 = vset.pattern.permute.xlu0 1
      %904 = vperm.xlu0 %903, %v300
      %v905 = vpop.permute.xlu0 %904
      %907 = vset.pattern.permute.xlu0 1
      %908 = vperm.xlu0 %907, %v301
      %v909 = vpop.permute.xlu0 %908
      %911 = vset.pattern.permute.xlu0 1
      %912 = vperm.xlu0 %911, %v302
      %v913 = vpop.permute.xlu0 %912
      %915 = vset.pattern.permute.xlu0 1
      %916 = vperm.xlu0 %915, %v303
      %v917 = vpop.permute.xlu0 %916
      %919 = vset.pattern.permute.xlu0 1
      %920 = vperm.xlu0 %919, %v304
      %v921 = vpop.permute.xlu0 %920
      %923 = vset.pattern.permute.xlu0 1
      %924 = vperm.xlu0 %923, %v305
      %v925 = vpop.permute.xlu0 %924
      %927 = vset.pattern.permute.xlu0 1
      %928 = vperm.xlu0 %927, %v306
      %v929 = vpop.permute.xlu0 %928
      %931 = vset.pattern.permute.xlu0 1
      %932 = vperm.xlu0 %931, %v307
      %v933 = vpop.permute.xlu0 %932
      %935 = vset.pattern.permute.xlu0 1
      %936 = vperm.xlu0 %935, %v308
      %v937 = vpop.permute.xlu0 %936
      %939 = vset.pattern.permute.xlu0 1
      %940 = vperm.xlu0 %939, %v309
      %v941 = vpop.permute.xlu0 %940
      %943 = vset.pattern.permute.xlu0 1
      %944 = vperm.xlu0 %943, %v310
      %v945 = vpop.permute.xlu0 %944
      %947 = vset.pattern.permute.xlu0 1
      %948 = vperm.xlu0 %947, %v311
      %v949 = vpop.permute.xlu0 %948
      %951 = vset.pattern.permute.xlu0 1
      %952 = vperm.xlu0 %951, %v312
      %v953 = vpop.permute.xlu0 %952
      %955 = vset.pattern.permute.xlu0 1
      %956 = vperm.xlu0 %955, %v313
      %v957 = vpop.permute.xlu0 %956
      %959 = vset.pattern.permute.xlu0 1
      %960 = vperm.xlu0 %959, %v314
      %v961 = vpop.permute.xlu0 %960
      %v963 = vlaneseq
      %v964 = vshrl.u32 %v963, 7
      %v965 = vsub.s32 0, %v964
      %v966 = vrot.slane %v834, %v965
      %v967 = vmul.f32 %v837, %v966
      %v968 = vmul.f32 %v841, %v966
      %v969 = vmul.f32 %v845, %v966
      %v970 = vmul.f32 %v849, %v966
      %v971 = vmul.f32 %v853, %v966
      %v972 = vmul.f32 %v857, %v966
      %v973 = vmul.f32 %v861, %v966
      %v974 = vmul.f32 %v865, %v966
      %v975 = vmul.f32 %v869, %v966
      %v976 = vmul.f32 %v873, %v966
      %v977 = vmul.f32 %v877, %v966
      %v978 = vmul.f32 %v881, %v966
      %v979 = vmul.f32 %v885, %v966
      %v980 = vmul.f32 %v889, %v966
      %v981 = vmul.f32 %v893, %v966
      %v982 = vmul.f32 %v897, %v966
      %v983 = vmul.f32 %v901, %v966
      %v984 = vmul.f32 %v905, %v966
      %v985 = vmul.f32 %v909, %v966
      %v986 = vmul.f32 %v913, %v966
      %v987 = vmul.f32 %v917, %v966
      %v988 = vmul.f32 %v921, %v966
      %v989 = vmul.f32 %v925, %v966
      %v990 = vmul.f32 %v929, %v966
      %v991 = vmul.f32 %v933, %v966
      %v992 = vmul.f32 %v937, %v966
      %v993 = vmul.f32 %v941, %v966
      %v994 = vmul.f32 %v945, %v966
      %v995 = vmul.f32 %v949, %v966
      %v996 = vmul.f32 %v953, %v966
      %v997 = vmul.f32 %v957, %v966
      %v998 = vmul.f32 %v961, %v966
      %v999 = vadd.f32 %v676, %v967
      %v1000 = vadd.f32 %v681, %v968
      %v1001 = vadd.f32 %v686, %v969
      %v1002 = vadd.f32 %v691, %v970
      %v1003 = vadd.f32 %v696, %v971
      %v1004 = vadd.f32 %v701, %v972
      %v1005 = vadd.f32 %v706, %v973
      %v1006 = vadd.f32 %v711, %v974
      %v1007 = vadd.f32 %v716, %v975
      %v1008 = vadd.f32 %v721, %v976
      %v1009 = vadd.f32 %v726, %v977
      %v1010 = vadd.f32 %v731, %v978
      %v1011 = vadd.f32 %v736, %v979
      %v1012 = vadd.f32 %v741, %v980
      %v1013 = vadd.f32 %v746, %v981
      %v1014 = vadd.f32 %v751, %v982
      %v1015 = vadd.f32 %v756, %v983
      %v1016 = vadd.f32 %v761, %v984
      %v1017 = vadd.f32 %v766, %v985
      %v1018 = vadd.f32 %v771, %v986
      %v1019 = vadd.f32 %v776, %v987
      %v1020 = vadd.f32 %v781, %v988
      %v1021 = vadd.f32 %v786, %v989
      %v1022 = vadd.f32 %v791, %v990
      %v1023 = vadd.f32 %v796, %v991
      %v1024 = vadd.f32 %v801, %v992
      %v1025 = vadd.f32 %v806, %v993
      %v1026 = vadd.f32 %v811, %v994
      %v1027 = vadd.f32 %v816, %v995
      %v1028 = vadd.f32 %v821, %v996
      %v1029 = vadd.f32 %v826, %v997
      %v1030 = vadd.f32 %v831, %v998
      %v1031 = vld [vmem:[%s4] sm:$0x1]
      %v1033 = vlaneseq
      %v1034 = vshrl.u32 %v1033, 7
      %v1035 = vsub.s32 0, %v1034
      %v1036 = vrot.slane %v1031, %v1035
      %v1038 = vadd.f32 %v999, %v1036
      %v1039 = vadd.f32 %v1000, %v1036
      %v1040 = vadd.f32 %v1001, %v1036
      %v1041 = vadd.f32 %v1002, %v1036
      %v1042 = vadd.f32 %v1003, %v1036
      %v1043 = vadd.f32 %v1004, %v1036
      %v1044 = vadd.f32 %v1005, %v1036
      %v1045 = vadd.f32 %v1006, %v1036
      %v1046 = vadd.f32 %v1007, %v1036
      %v1047 = vadd.f32 %v1008, %v1036
      %v1048 = vadd.f32 %v1009, %v1036
      %v1049 = vadd.f32 %v1010, %v1036
      %v1050 = vadd.f32 %v1011, %v1036
      %v1051 = vadd.f32 %v1012, %v1036
      %v1052 = vadd.f32 %v1013, %v1036
      %v1053 = vadd.f32 %v1014, %v1036
      %v1054 = vadd.f32 %v1015, %v1036
      %v1055 = vadd.f32 %v1016, %v1036
      %v1056 = vadd.f32 %v1017, %v1036
      %v1057 = vadd.f32 %v1018, %v1036
      %v1058 = vadd.f32 %v1019, %v1036
      %v1059 = vadd.f32 %v1020, %v1036
      %v1060 = vadd.f32 %v1021, %v1036
      %v1061 = vadd.f32 %v1022, %v1036
      %v1062 = vadd.f32 %v1023, %v1036
      %v1063 = vadd.f32 %v1024, %v1036
      %v1064 = vadd.f32 %v1025, %v1036
      %v1065 = vadd.f32 %v1026, %v1036
      %v1066 = vadd.f32 %v1027, %v1036
      %v1067 = vadd.f32 %v1028, %v1036
      %v1068 = vadd.f32 %v1029, %v1036
      %v1069 = vadd.f32 %v1030, %v1036
      %vm1070 = vcmask 130048
      %1071 = vst.msk [vmem:[%s248] sm:$0xff] %vm1070, %v1038
      %1072 = vst.msk [vmem:[%s248 + $0x8] sm:$0xff] %vm1070, %v1039
      %1073 = vst.msk [vmem:[%s248 + $0x10] sm:$0xff] %vm1070, %v1040
      %1074 = vst.msk [vmem:[%s248 + $0x18] sm:$0xff] %vm1070, %v1041
      %1075 = vst.msk [vmem:[%s248 + $0x20] sm:$0xff] %vm1070, %v1042
      %1076 = vst.msk [vmem:[%s248 + $0x28] sm:$0xff] %vm1070, %v1043
      %1077 = vst.msk [vmem:[%s248 + $0x30] sm:$0xff] %vm1070, %v1044
      %1078 = vst.msk [vmem:[%s248 + $0x38] sm:$0xff] %vm1070, %v1045
      %1079 = vst.msk [vmem:[%s248 + $0x40] sm:$0xff] %vm1070, %v1046
      %1080 = vst.msk [vmem:[%s248 + $0x48] sm:$0xff] %vm1070, %v1047
      %1081 = vst.msk [vmem:[%s248 + $0x50] sm:$0xff] %vm1070, %v1048
      %1082 = vst.msk [vmem:[%s248 + $0x58] sm:$0xff] %vm1070, %v1049
      %1083 = vst.msk [vmem:[%s248 + $0x60] sm:$0xff] %vm1070, %v1050
      %1084 = vst.msk [vmem:[%s248 + $0x68] sm:$0xff] %vm1070, %v1051
      %1085 = vst.msk [vmem:[%s248 + $0x70] sm:$0xff] %vm1070, %v1052
      %1086 = vst.msk [vmem:[%s248 + $0x78] sm:$0xff] %vm1070, %v1053
      %1087 = vst.msk [vmem:[%s248 + $0x80] sm:$0xff] %vm1070, %v1054
      %1088 = vst.msk [vmem:[%s248 + $0x88] sm:$0xff] %vm1070, %v1055
      %1089 = vst.msk [vmem:[%s248 + $0x90] sm:$0xff] %vm1070, %v1056
      %1090 = vst.msk [vmem:[%s248 + $0x98] sm:$0xff] %vm1070, %v1057
      %1091 = vst.msk [vmem:[%s248 + $0xa0] sm:$0xff] %vm1070, %v1058
      %1092 = vst.msk [vmem:[%s248 + $0xa8] sm:$0xff] %vm1070, %v1059
      %1093 = vst.msk [vmem:[%s248 + $0xb0] sm:$0xff] %vm1070, %v1060
      %1094 = vst.msk [vmem:[%s248 + $0xb8] sm:$0xff] %vm1070, %v1061
      %1095 = vst.msk [vmem:[%s248 + $0xc0] sm:$0xff] %vm1070, %v1062
      %1096 = vst.msk [vmem:[%s248 + $0xc8] sm:$0xff] %vm1070, %v1063
      %1097 = vst.msk [vmem:[%s248 + $0xd0] sm:$0xff] %vm1070, %v1064
      %1098 = vst.msk [vmem:[%s248 + $0xd8] sm:$0xff] %vm1070, %v1065
      %1099 = vst.msk [vmem:[%s248 + $0xe0] sm:$0xff] %vm1070, %v1066
      %1100 = vst.msk [vmem:[%s248 + $0xe8] sm:$0xff] %vm1070, %v1067
      %1101 = vst.msk [vmem:[%s248 + $0xf0] sm:$0xff] %vm1070, %v1068
      %1102 = vst.msk [vmem:[%s248 + $0xf8] sm:$0xff] %vm1070, %v1069
      %s1103 = smul.u32 32, %s16
      %p1104 = scmp.lt.s32.totalorder %s1103, 63
      %s1105 = scalar_select %p1104, %s1103, 63
      %s1106 = smul.addr %s1105, 8
      %s1107 = scalar_lea.vmem %s5, %s1106
      // Predicated region
      $region41: #{tpu_custom_call.1} parent=39 // pred_check
        %p1108 = pneg %p149
      $region42: #{tpu_custom_call.1} parent=39 // pred_check_branch
        %1110 = sbr.rel (%p1108) target = $region44
      $region43: #{tpu_custom_call.1} parent=39 // pred_region
        %s1111 = smul.u32 32, %s16
      $region44: #{tpu_custom_call.1} parent=39 // pred_fallthru
        _
    $region40: #{tpu_custom_call.1} parent=5 // pred_fallthru
      _
    %p1112 = scmp.le.s32.totalorder 2, %s11
    // Predicated region
    $region45: #{tpu_custom_call.1} parent=5 // pred_check
      %p1113 = pneg %p1112
    $region46: #{tpu_custom_call.1} parent=5 // pred_check_branch
      %1115 = sbr.rel (%p1113) target = $region48
    $region47: #{tpu_custom_call.1} parent=5 // pred_region
      %s1116 = ssub.s32 %s11, 2
      // Predicated region
      $region49: #{tpu_custom_call.1} parent=47 // pred_check
        %p1117 = pneg %p155
      $region50: #{tpu_custom_call.1} parent=47 // pred_check_branch
        %1119 = sbr.rel (%p1117) target = $region52
      $region51: #{tpu_custom_call.1} parent=47 // pred_region
        %s1120 = smul.u32 32, %s17
        %p1121 = scmp.lt.s32.totalorder %s1120, 63
        %s1122 = scalar_select %p1121, %s1120, 63
        %s1123 = smul.addr %s1122, 8
        %s1124 = scalar_lea.vmem %s5, %s1123
      $region52: #{tpu_custom_call.1} parent=47 // pred_fallthru
        _
    $region48: #{tpu_custom_call.1} parent=5 // pred_fallthru
      _
  $region6: #{tpu_custom_call.1} parent=0 // loop_footer
    %s15 = sadd.s32 1, %s11
  $region7: #{tpu_custom_call.1} parent=0 // loop_footer_branch
    %10 = sbr.rel target = $region3
  $region8: #{tpu_custom_call.1} parent=0 // loop_exit
    _

</llo_original>
